<compile_context>
chip_gen: v7x
topology: tpu7x:2x2x1
jax: 0.10.0
libtpu: 0.0.40
codegen_flags: <defaults>
</compile_context>

<pallas_src>
import functools

import jax
import jax.numpy as jnp
from jax.experimental import pallas as pl
from jax.experimental.pallas import tpu as pltpu


def _ceil_to(x, m):
    return -(-x // m) * m


def _vmem_capacity_bytes(default=64 << 20):
    """Physical VMEM of the local chip; conservative v7x default on failure."""
    try:
        cap = int(pltpu.get_tpu_info().vmem_capacity_bytes)
        return cap if cap > 0 else default
    except Exception:
        return default


def _choose_pack_pooled(Wo, K, Cout):
    """Pack p output columns into lanes (p | Wo); K is 2*Cin (both w-taps)."""
    if K >= 128:
        return 1                      # already lane-dense; no MXU blow-up
    best_d, best_key = 1, None
    for d in range(1, Wo + 1):
        if Wo % d or d * K > 256 or d * Cout > 512:
            continue
        wq = Wo // d
        key = (min(d * K, 128),       # lane density up to a full lane tile
               int(wq % 8 == 0),      # free sublane-merge reshape in-kernel
               min(wq, 8),            # sublane density of the input block
               -d)                    # least extra MXU work
        if best_key is None or key > best_key:
            best_d, best_key = d, key
    return best_d


def _choose_pack_flat(M, K, Cout):
    """Pack p flattened positions into lanes (p | M) for the no-pool path."""
    if K >= 128:
        return 1
    cap = max(1, min(M, 256 // K, 512 // max(Cout, 1)))
    for d in range(cap, 0, -1):
        if M % d == 0:
            return d
    return 1


def _largest_valid_tile(total_units, rows_per_unit, align_rows, cap_units):
    """Largest d <= cap_units with d | total_units and d*rows_per_unit aligned."""
    for d in range(max(1, min(cap_units, total_units)), 0, -1):
        if total_units % d == 0 and (d * rows_per_unit) % align_rows == 0:
            return d
    return None


def _dshortcut_kernel(x_ref, w_ref, b_ref, o_ref, *, pooled):
    # pooled=True : x_ref is (tr, 2, Wq, p*K).  The h-taps sit in the size-2
    #               major axis and are summed with one VPU add; the w-taps and
    #               the packed spatial positions sit in the lane axis and are
    #               handled by the block-diagonal folded weight (which also
    #               carries the 1/4 pooling factor and the BN scale).
    # pooled=False: x_ref is (tm, p*K) lane-packed rows.
    # w_ref: (p*K, p*Cout) block-diagonal folded weight.
    # b_ref: (1, p*Cout) folded BN bias (f32, tiled p times).
    # o_ref: (rows, p*Cout) lane-dense output block -- no output reshape.
    if pooled:
        x = x_ref[...]
        lhs = x[:, 0] + x[:, 1]                   # h-tap sum (VPU)
        lhs = lhs.reshape(-1, lhs.shape[-1])      # free when Wq % 8 == 0
    else:
        lhs = x_ref[...]
    y = jnp.dot(lhs, w_ref[...], preferred_element_type=jnp.float32)
    o_ref[...] = (y + b_ref[...]).astype(o_ref.dtype)


def dshortcut_forward_nhwc(x_nhwc, conv_weight, bn_scale, bn_bias, *, has_avg,
                           vmem_budget_bytes=None):
    """NHWC-native fused AvgPool2x2 + 1x1 conv + folded BN.

    x_nhwc: (N, H, W, Cin); conv_weight: (Cout, Cin, 1, 1);
    bn_scale/bn_bias: (Cout,) folded BN params (ones/zeros if no BN).
    Returns (N, Ho, Wo, Cout) in NHWC.  All pre/post reshapes are free views.
    """
    N, H, W, Cin = x_nhwc.shape
    Cout = conv_weight.shape[0]
    itemsize = jnp.dtype(x_nhwc.dtype).itemsize

    # Generation-aware VMEM budgeting (64 MiB on v7x vs 128 MiB on v5e/v6e).
    vmem_cap = _vmem_capacity_bytes()
    if vmem_budget_bytes is None:
        vmem_budget_bytes = max(4 << 20, min(16 << 20, vmem_cap // 8))

    # Fold BN scale into the 1x1-conv weight in f32.  Keep the folded weight
    # in f32 for f32 activations (matches reference rounding); narrow it only
    # when the activations themselves are narrow (bf16/f16 MXU path).
    w_fold = jnp.transpose(conv_weight.reshape(Cout, Cin)).astype(jnp.float32)
    w_fold = w_fold * bn_scale.reshape(1, Cout).astype(jnp.float32)
    bias_f32 = bn_bias.reshape(1, Cout).astype(jnp.float32)
    w_dtype = x_nhwc.dtype if itemsize < 4 else jnp.float32

    if has_avg:
        Ho, Wo = H // 2, W // 2
        if (H % 2) or (W % 2):
            # TODO(synk): crop inside the kernel (index_map over the even
            # region) to avoid this HBM copy for odd spatial dims.
            x_nhwc = x_nhwc[:, :2 * Ho, :2 * Wo, :]
        K = 2 * Cin
        p = _choose_pack_pooled(Wo, K, Cout)
        Wq = Wo // p
        units = N * Ho                        # grid iterates over row-pairs
        rows_per_unit = Wq                    # packed output rows per unit
        x_in = x_nhwc.reshape(units, 2, Wq, p * K)            # free view
        w_tap = jnp.concatenate([w_fold, w_fold], axis=0) * 0.25  # (2*Cin,Cout)
        w_in = jnp.kron(jnp.eye(p, dtype=jnp.float32), w_tap)    # block-diag
        in_bytes_per_unit = 2 * _ceil_to(Wq, 8) * _ceil_to(p * K, 128) * itemsize
        tmp_bytes_per_unit = _ceil_to(Wq, 8) * _ceil_to(p * K, 128) * itemsize
    else:
        Ho, Wo = H, W
        M = N * H * W
        K = Cin
        p = _choose_pack_flat(M, K, Cout)
        units = M // p
        rows_per_unit = 1
        x_in = x_nhwc.reshape(units, p * K)                   # free view
        w_in = jnp.kron(jnp.eye(p, dtype=jnp.float32), w_fold)
        in_bytes_per_unit = _ceil_to(p * K, 128) * itemsize
        tmp_bytes_per_unit = 0

    w_in = w_in.astype(w_dtype)
    bias_in = jnp.tile(bias_f32, (1, p))                      # (1, p*Cout) f32

    out_cols = p * Cout
    out_rows = units * rows_per_unit
    out_bytes_per_unit = rows_per_unit * _ceil_to(out_cols, 128) * itemsize
    acc_bytes_per_unit = rows_per_unit * _ceil_to(out_cols, 128) * 4  # f32 y

    # Double-buffered in/out blocks + in-kernel temporaries, per unit.
    bytes_per_unit = (2 * (in_bytes_per_unit + out_bytes_per_unit)
                      + tmp_bytes_per_unit + acc_bytes_per_unit)
    cap_units = max(1, min(
        units,
        vmem_budget_bytes // max(bytes_per_unit, 1),
        max(1, (4 << 20) // max(in_bytes_per_unit, 1))))      # ~4 MiB blocks

    # Prefer >=8 grid steps (>=4 per TensorCore on 2-TC parts) while the
    # per-step input block stays >= ~512 KiB; per-step overhead (~0.35 us) is
    # negligible against the multi-MiB DMAs being hidden.
    tile_units = None
    for min_steps in (8, 4, 2, 1):
        if units < min_steps:
            continue
        cand = _largest_valid_tile(units, rows_per_unit, 8,
                                   min(cap_units, units // min_steps))
        if cand is None:
            continue
        if min_steps == 1 or cand * in_bytes_per_unit >= (512 << 10):
            tile_units = cand
            break
    if tile_units is None:
        tile_units = units              # single full-array block: always legal

    rows_per_step = tile_units * rows_per_unit
    grid = (units // tile_units,)

    if has_avg:
        x_spec = pl.BlockSpec((tile_units, 2, Wq, p * K),
                              lambda i: (i, 0, 0, 0))
    else:
        x_spec = pl.BlockSpec((tile_units, p * K), lambda i: (i, 0))
    out_spec = pl.BlockSpec((rows_per_step, out_cols), lambda i: (i, 0))
    out_shape = jax.ShapeDtypeStruct((out_rows, out_cols), x_nhwc.dtype)

    # VMEM limit from actual padded usage + margin, clamped to chip capacity.
    w_bytes = (_ceil_to(w_in.shape[0], 8) * _ceil_to(w_in.shape[1], 128)
               * jnp.dtype(w_dtype).itemsize)
    b_bytes = 8 * _ceil_to(out_cols, 128) * 4
    used = tile_units * bytes_per_unit + 2 * (w_bytes + b_bytes)
    vmem_limit = int(min(max(used + (8 << 20), 16 << 20),
                         max(vmem_cap - (8 << 20), 16 << 20)))

    kernel = functools.partial(_dshortcut_kernel, pooled=has_avg)
    out = pl.pallas_call(
        kernel,
        out_shape=out_shape,
        grid=grid,
        in_specs=[x_spec,
                  pl.BlockSpec(w_in.shape, lambda i: (0, 0)),
                  pl.BlockSpec((1, out_cols), lambda i: (0, 0))],
        out_specs=out_spec,
        compiler_params=pltpu.CompilerParams(
            dimension_semantics=("parallel",),
            vmem_limit_bytes=vmem_limit),
    )(x_in, w_in, bias_in)

    return out.reshape(N, Ho, Wo, Cout)                 # free view back


def dshortcut_forward(x_nchw, conv_weight, bn_scale, bn_bias, *, has_avg):
    """NCHW compatibility wrapper matching the PyTorch module interface.

    The two transposes below are the only HBM layout copies; production code
    should keep the graph in NHWC and call dshortcut_forward_nhwc directly.
    """
    x = jnp.transpose(x_nchw, (0, 2, 3, 1))             # NCHW -> NHWC
    out = dshortcut_forward_nhwc(x, conv_weight, bn_scale, bn_bias,
                                 has_avg=has_avg)
    return jnp.transpose(out, (0, 3, 1, 2))             # NHWC -> NCHW


def _reference_forward(x_nchw, conv_weight, bn_scale, bn_bias, *, has_avg):
    """Pure-JAX reference mirroring the PyTorch module."""
    x = x_nchw
    if has_avg:
        N, C, H, W = x.shape
        x = x[:, :, :2 * (H // 2), :2 * (W // 2)]
        x = x.reshape(N, C, H // 2, 2, W // 2, 2).mean(axis=(3, 5))
    w = conv_weight.reshape(conv_weight.shape[0], conv_weight.shape[1])
    out = jnp.einsum('nchw,oc->nohw', x, w)
    out = out * bn_scale[None, :, None, None] + bn_bias[None, :, None, None]
    return out


def _fold_bn(gamma, beta, running_mean, running_var, eps=1e-5):
    scale = gamma / jnp.sqrt(running_var + eps)
    bias = beta - running_mean * scale
    return scale, bias


if __name__ == "__main__":
    key = jax.random.PRNGKey(0)
    kx, kw, kg, kb, km, kv = jax.random.split(key, 6)

    N, Cin, H, W = 2, 4, 16, 16
    Cout = 8

    x = jax.random.normal(kx, (N, Cin, H, W), dtype=jnp.float32)
    conv_weight = jax.random.normal(kw, (Cout, Cin, 1, 1),
                                    dtype=jnp.float32) * 0.1

    # Deterministic BatchNorm2d(affine=True) params + running stats.
    gamma = 1.0 + 0.1 * jax.random.normal(kg, (Cout,), dtype=jnp.float32)
    beta = 0.1 * jax.random.normal(kb, (Cout,), dtype=jnp.float32)
    running_mean = 0.05 * jax.random.normal(km, (Cout,), dtype=jnp.float32)
    running_var = 1.0 + 0.1 * jnp.abs(
        jax.random.normal(kv, (Cout,), dtype=jnp.float32))

    ok = True
    for has_avg in (True, False):
        for has_bn in (True, False):
            if has_bn:
                scale, bias = _fold_bn(gamma, beta, running_mean, running_var)
            else:
                scale = jnp.ones((Cout,), jnp.float32)
                bias = jnp.zeros((Cout,), jnp.float32)

            out = dshortcut_forward(x, conv_weight, scale, bias,
                                    has_avg=has_avg)
            out = jax.block_until_ready(out)
            ref = _reference_forward(x, conv_weight, scale, bias,
                                     has_avg=has_avg)
            ok = ok and bool(jnp.allclose(out, ref, atol=1e-4, rtol=1e-4))

    if ok:
        print("KERNEL_OK")
    else:
        print("KERNEL_MISMATCH")
</pallas_src>

<mosaic_0001>
module attributes {stable_mosaic.version = 11 : i64} {
  func.func @_dshortcut_kernel(%arg0: i32, %arg1: memref<16x2x1x64xf32, #tpu.memory_space<vmem>>, %arg2: memref<64x64xf32, #tpu.memory_space<vmem>>, %arg3: memref<1x64xf32, #tpu.memory_space<vmem>>, %arg4: memref<16x64xf32, #tpu.memory_space<vmem>>) attributes {dimension_semantics = [#tpu.dimension_semantics<parallel>], iteration_bounds = array<i64: 1>, scalar_prefetch = 0 : i64, scratch_operands = 0 : i64, tpu.core_type = #tpu.core_type<tc>, window_params = [{transform_indices = @transform_0, window_bounds = array<i64: 16, 2, 1, 64>}, {pipeline_mode = #tpu.pipeline_mode<synchronous>, transform_indices = @transform_1, window_bounds = array<i64: 64, 64>}, {pipeline_mode = #tpu.pipeline_mode<synchronous>, transform_indices = @transform_2, window_bounds = array<i64: 1, 64>}, {transform_indices = @transform_3, window_bounds = array<i64: 16, 64>}]} {
    %c0 = arith.constant 0 : index
    %c0_0 = arith.constant 0 : index
    %c0_1 = arith.constant 0 : index
    %c0_2 = arith.constant 0 : index
    %0 = vector.load %arg1[%c0, %c0_0, %c0_1, %c0_2] : memref<16x2x1x64xf32, #tpu.memory_space<vmem>>, vector<16x2x1x64xf32>
    %1 = vector.extract_strided_slice %0 {offsets = [0, 0, 0, 0], sizes = [16, 1, 1, 64], strides = [1, 1, 1, 1]} : vector<16x2x1x64xf32> to vector<16x1x1x64xf32>
    %2 = vector.shape_cast %1 : vector<16x1x1x64xf32> to vector<16x1x64xf32>
    %3 = vector.extract_strided_slice %0 {offsets = [0, 1, 0, 0], sizes = [16, 1, 1, 64], strides = [1, 1, 1, 1]} : vector<16x2x1x64xf32> to vector<16x1x1x64xf32>
    %4 = vector.shape_cast %3 : vector<16x1x1x64xf32> to vector<16x1x64xf32>
    %5 = arith.addf %2, %4 : vector<16x1x64xf32>
    %6 = vector.shape_cast %5 : vector<16x1x64xf32> to vector<16x64xf32>
    %c0_3 = arith.constant 0 : index
    %c0_4 = arith.constant 0 : index
    %7 = vector.load %arg2[%c0_3, %c0_4] : memref<64x64xf32, #tpu.memory_space<vmem>>, vector<64x64xf32>
    %cst = arith.constant dense<0.000000e+00> : vector<16x64xf32>
    %8 = tpu.matmul %6, %7, %cst {dimension_numbers = #tpu.dot_dimension_numbers<[1], [0], [0], [1], [0, 0, 1, 1], [], []>} : vector<16x64xf32>, vector<64x64xf32>, vector<16x64xf32> -> vector<16x64xf32>
    %c0_5 = arith.constant 0 : index
    %c0_6 = arith.constant 0 : index
    %9 = vector.load %arg3[%c0_5, %c0_6] : memref<1x64xf32, #tpu.memory_space<vmem>>, vector<1x64xf32>
    %10 = vector.broadcast %9 : vector<1x64xf32> to vector<16x64xf32>
    %11 = arith.addf %8, %10 : vector<16x64xf32>
    %c0_7 = arith.constant 0 : index
    %c0_8 = arith.constant 0 : index
    %12 = vector.load %arg4[%c0_7, %c0_8] : memref<16x64xf32, #tpu.memory_space<vmem>>, vector<16x64xf32>
    tpu.vector_store %arg4[%c0_7, %c0_8], %11 {strides = array<i32>} : memref<16x64xf32, #tpu.memory_space<vmem>>, vector<16x64xf32>,
    return
  }
  func.func @transform_0(%arg0: i32) -> (i32, i32, i32, i32) {
    %c0_i32 = arith.constant 0 : i32
    %c0_i32_0 = arith.constant 0 : i32
    %c0_i32_1 = arith.constant 0 : i32
    %c0_i32_2 = arith.constant 0 : i32
    return %arg0, %c0_i32, %c0_i32_0, %c0_i32_1 : i32, i32, i32, i32
  }
  func.func @transform_1(%arg0: i32) -> (i32, i32) {
    %c0_i32 = arith.constant 0 : i32
    %c0_i32_0 = arith.constant 0 : i32
    %c0_i32_1 = arith.constant 0 : i32
    return %c0_i32, %c0_i32_0 : i32, i32
  }
  func.func @transform_2(%arg0: i32) -> (i32, i32) {
    %c0_i32 = arith.constant 0 : i32
    %c0_i32_0 = arith.constant 0 : i32
    %c0_i32_1 = arith.constant 0 : i32
    return %c0_i32, %c0_i32_0 : i32, i32
  }
  func.func @transform_3(%arg0: i32) -> (i32, i32) {
    %c0_i32 = arith.constant 0 : i32
    %c0_i32_0 = arith.constant 0 : i32
    return %arg0, %c0_i32 : i32, i32
  }
}

</mosaic_0001>

<llo_original>
// kernel: tpu_custom_call.1
$region0: #{tpu_custom_call.1}
  #allocation0 [shape = 'u32[]', space=smem, size = 0x4, offset = 0x4, fixed_abs, tag = 'smem constant byte address 0x4 - core index']
  #allocation1 [shape = 'u32[144,128]{1,0:T(1,128)}', space=vmem, size = 0x12000, scoped, tag = 'internal scratch']
  %s0 = inlined_call_operand.hbm [shape: f32[16,2,1,64], index: 0, kind: input, shape index: {}]
  %s1 = inlined_call_operand.hbm [shape: f32[64,64], index: 1, kind: input, shape index: {}]
  %s2 = inlined_call_operand.vmem [shape: f32[1,64], index: 2, kind: input, shape index: {}]
  %s3 = inlined_call_operand.hbm [shape: f32[16,64], index: 3, kind: output, shape index: {}]
  %s4 = sld [smem:[#allocation0]]
  $region30: #{tpu_custom_call.1} parent=0
    _
  %s6 = ssub.s32 1, %s4
  %s7 = scalar_select 0, %s6, %s4
  $region1: #{tpu_custom_call.1} parent=0
    #allocation2 [shape = 'u8[16384]{0}', space=vmem, size = 0x4000, scoped, tag = 'input window, operand 0, single buffered']
    #allocation3 [shape = 's32[1]{0}', space=sflag, size = 0x4, scoped, tag = 'scoped memory for tpu_custom_call.1']
    #allocation4 [shape = 's32[1]{0}', space=sflag, size = 0x4, scoped, tag = 'scoped memory for tpu_custom_call.1']
    #allocation5 [shape = 'u8[32768]{0}', space=vmem, size = 0x8000, scoped, tag = 'input window, operand 1, single buffered']
    #allocation6 [shape = 's32[1]{0}', space=sflag, size = 0x4, scoped, tag = 'scoped memory for tpu_custom_call.1']
    #allocation7 [shape = 'u8[8192]{0}', space=vmem, size = 0x2000, scoped, tag = 'output window, operand 0, single buffered']
    %8 = vsyncpa [#allocation3], 0
    %9 = vsyncpa [#allocation6], 0
    %10 = vsyncpa [#allocation4], 0
    // Predicated region
    $region2: #{tpu_custom_call.1} parent=1 // pred_check
      _
    $region3: #{tpu_custom_call.1} parent=1 // pred_check_branch
      %12 = sbr.rel (0) target = $region5
    $region4: #{tpu_custom_call.1} parent=1 // pred_region
      %s14 = ssub.s32 512, 512
      %15 = vsyncadd [#allocation3], %s14
      %s16 = sshll.u32 [#allocation2], 4
      %s17 = int_to_ptr.vmem [resolvable:$true] %s16
      %22 = dma.hbm_to_vmem [thread:$0]  %s0, 512, %s17, [#allocation3], 16, 16, 1
    $region5: #{tpu_custom_call.1} parent=1 // pred_fallthru
      _
    // Predicated region
    $region6: #{tpu_custom_call.1} parent=1 // pred_check
      _
    $region7: #{tpu_custom_call.1} parent=1 // pred_check_branch
      %24 = sbr.rel (0) target = $region9
    $region8: #{tpu_custom_call.1} parent=1 // pred_region
      %s26 = ssub.s32 1024, 1024
      %27 = vsyncadd [#allocation6], %s26
      %s28 = sshll.u32 [#allocation5], 4
      %s29 = int_to_ptr.vmem [resolvable:$true] %s28
      %34 = dma.hbm_to_vmem [thread:$0]  %s1, 1024, %s29, [#allocation6], 128, 128, 8
    $region9: #{tpu_custom_call.1} parent=1 // pred_fallthru
      _
    // Predicated region
    $region10: #{tpu_custom_call.1} parent=1 // pred_check
      _
    $region11: #{tpu_custom_call.1} parent=1 // pred_check_branch
      %36 = sbr.rel (0) target = $region13
    $region12: #{tpu_custom_call.1} parent=1 // pred_region
      _
    $region13: #{tpu_custom_call.1} parent=1 // pred_fallthru
      _
    // Predicated region
    $region14: #{tpu_custom_call.1} parent=1 // pred_check
      _
    $region15: #{tpu_custom_call.1} parent=1 // pred_check_branch
      %38 = sbr.rel (0) target = $region17
    $region16: #{tpu_custom_call.1} parent=1 // pred_region
      %39 = dma.done [#allocation3], 512
    $region17: #{tpu_custom_call.1} parent=1 // pred_fallthru
      _
    // Predicated region
    $region18: #{tpu_custom_call.1} parent=1 // pred_check
      _
    $region19: #{tpu_custom_call.1} parent=1 // pred_check_branch
      %41 = sbr.rel (0) target = $region21
    $region20: #{tpu_custom_call.1} parent=1 // pred_region
      %42 = dma.done [#allocation6], 1024
    $region21: #{tpu_custom_call.1} parent=1 // pred_fallthru
      _
    %v43 = vld [vmem:[#allocation2] sm:$0x1]
    %v44 = vld [vmem:[#allocation2 + $0x1] sm:$0x1]
    %v45 = vld [vmem:[#allocation2 + $0x2] sm:$0x1]
    %v46 = vld [vmem:[#allocation2 + $0x3] sm:$0x1]
    %v47 = vld [vmem:[#allocation2 + $0x4] sm:$0x1]
    %v48 = vld [vmem:[#allocation2 + $0x5] sm:$0x1]
    %v49 = vld [vmem:[#allocation2 + $0x6] sm:$0x1]
    %v50 = vld [vmem:[#allocation2 + $0x7] sm:$0x1]
    %v51 = vld [vmem:[#allocation2 + $0x8] sm:$0x1]
    %v52 = vld [vmem:[#allocation2 + $0x9] sm:$0x1]
    %v53 = vld [vmem:[#allocation2 + $0xa] sm:$0x1]
    %v54 = vld [vmem:[#allocation2 + $0xb] sm:$0x1]
    %v55 = vld [vmem:[#allocation2 + $0xc] sm:$0x1]
    %v56 = vld [vmem:[#allocation2 + $0xd] sm:$0x1]
    %v57 = vld [vmem:[#allocation2 + $0xe] sm:$0x1]
    %v58 = vld [vmem:[#allocation2 + $0xf] sm:$0x1]
    %v59 = vld [vmem:[#allocation2 + $0x10] sm:$0x1]
    %v60 = vld [vmem:[#allocation2 + $0x11] sm:$0x1]
    %v61 = vld [vmem:[#allocation2 + $0x12] sm:$0x1]
    %v62 = vld [vmem:[#allocation2 + $0x13] sm:$0x1]
    %v63 = vld [vmem:[#allocation2 + $0x14] sm:$0x1]
    %v64 = vld [vmem:[#allocation2 + $0x15] sm:$0x1]
    %v65 = vld [vmem:[#allocation2 + $0x16] sm:$0x1]
    %v66 = vld [vmem:[#allocation2 + $0x17] sm:$0x1]
    %v67 = vld [vmem:[#allocation2 + $0x18] sm:$0x1]
    %v68 = vld [vmem:[#allocation2 + $0x19] sm:$0x1]
    %v69 = vld [vmem:[#allocation2 + $0x1a] sm:$0x1]
    %v70 = vld [vmem:[#allocation2 + $0x1b] sm:$0x1]
    %v71 = vld [vmem:[#allocation2 + $0x1c] sm:$0x1]
    %v72 = vld [vmem:[#allocation2 + $0x1d] sm:$0x1]
    %v73 = vld [vmem:[#allocation2 + $0x1e] sm:$0x1]
    %v74 = vld [vmem:[#allocation2 + $0x1f] sm:$0x1]
    %v75 = vadd.f32 %v43, %v44
    %v76 = vadd.f32 %v45, %v46
    %v77 = vadd.f32 %v47, %v48
    %v78 = vadd.f32 %v49, %v50
    %v79 = vadd.f32 %v51, %v52
    %v80 = vadd.f32 %v53, %v54
    %v81 = vadd.f32 %v55, %v56
    %v82 = vadd.f32 %v57, %v58
    %v83 = vadd.f32 %v59, %v60
    %v84 = vadd.f32 %v61, %v62
    %v85 = vadd.f32 %v63, %v64
    %v86 = vadd.f32 %v65, %v66
    %v87 = vadd.f32 %v67, %v68
    %v88 = vadd.f32 %v69, %v70
    %v89 = vadd.f32 %v71, %v72
    %v90 = vadd.f32 %v73, %v74
    %v91 = vld [vmem:[#allocation5] sm:$0xff]
    %v92 = vld [vmem:[#allocation5 + $0x8] sm:$0xff]
    %v93 = vld [vmem:[#allocation5 + $0x10] sm:$0xff]
    %v94 = vld [vmem:[#allocation5 + $0x18] sm:$0xff]
    %v95 = vld [vmem:[#allocation5 + $0x20] sm:$0xff]
    %v96 = vld [vmem:[#allocation5 + $0x28] sm:$0xff]
    %v97 = vld [vmem:[#allocation5 + $0x30] sm:$0xff]
    %v98 = vld [vmem:[#allocation5 + $0x38] sm:$0xff]
    %v99 = vld [vmem:[%s2] sm:$0x1]
    %v101 = vlaneseq
    %v102 = vshrl.u32 %v101, 7
    %v103 = vsub.s32 0, %v102
    %v104 = vrot.slane %v99, %v103
    %v122 = vcombine.low %v75, %v76
    %v123 = vcombine.low %v77, %v78
    %v124 = vcombine.low %v79, %v80
    %v125 = vcombine.low %v81, %v82
    %v127 = vunpack.c.l.s4 1966171168
    %v128 = vunpack.c.0.s8 %v127
    %v129 = vlaneseq
    %v130 = vshrl.u32 %v129, 7
    %v131 = vsub.s32 %v128, %v130
    %v132 = vrot.slane %v122, %v131
    %v134 = vunpack.c.l.s4 1966171168
    %v135 = vunpack.c.0.s8 %v134
    %v136 = vlaneseq
    %v137 = vshrl.u32 %v136, 7
    %v138 = vsub.s32 %v135, %v137
    %v139 = vrot.slane %v123, %v138
    %v141 = vunpack.c.l.s4 1966171168
    %v142 = vunpack.c.0.s8 %v141
    %v143 = vlaneseq
    %v144 = vshrl.u32 %v143, 7
    %v145 = vsub.s32 %v142, %v144
    %v146 = vrot.slane %v124, %v145
    %v148 = vunpack.c.l.s4 1966171168
    %v149 = vunpack.c.0.s8 %v148
    %v150 = vlaneseq
    %v151 = vshrl.u32 %v150, 7
    %v152 = vsub.s32 %v149, %v151
    %v153 = vrot.slane %v125, %v152
    %v154 = vcombine.low %v132, %v139
    %v155 = vcombine.low %v146, %v153
    %v157 = vunpack.c.l.s4 1966171168
    %v158 = vunpack.c.0.s8 %v157
    %v159 = vlaneseq
    %v160 = vshrl.u32 %v159, 7
    %v161 = vsub.s32 %v158, %v160
    %v162 = vrot.slane %v154, %v161
    %v164 = vunpack.c.l.s4 1966171168
    %v165 = vunpack.c.0.s8 %v164
    %v166 = vlaneseq
    %v167 = vshrl.u32 %v166, 7
    %v168 = vsub.s32 %v165, %v167
    %v169 = vrot.slane %v155, %v168
    %v170 = vcombine.low %v162, %v169
    %v171 = vcombine.low %v83, %v84
    %v172 = vcombine.low %v85, %v86
    %v173 = vcombine.low %v87, %v88
    %v174 = vcombine.low %v89, %v90
    %v176 = vunpack.c.l.s4 1966171168
    %v177 = vunpack.c.0.s8 %v176
    %v178 = vlaneseq
    %v179 = vshrl.u32 %v178, 7
    %v180 = vsub.s32 %v177, %v179
    %v181 = vrot.slane %v171, %v180
    %v183 = vunpack.c.l.s4 1966171168
    %v184 = vunpack.c.0.s8 %v183
    %v185 = vlaneseq
    %v186 = vshrl.u32 %v185, 7
    %v187 = vsub.s32 %v184, %v186
    %v188 = vrot.slane %v172, %v187
    %v190 = vunpack.c.l.s4 1966171168
    %v191 = vunpack.c.0.s8 %v190
    %v192 = vlaneseq
    %v193 = vshrl.u32 %v192, 7
    %v194 = vsub.s32 %v191, %v193
    %v195 = vrot.slane %v173, %v194
    %v197 = vunpack.c.l.s4 1966171168
    %v198 = vunpack.c.0.s8 %v197
    %v199 = vlaneseq
    %v200 = vshrl.u32 %v199, 7
    %v201 = vsub.s32 %v198, %v200
    %v202 = vrot.slane %v174, %v201
    %v203 = vcombine.low %v181, %v188
    %v204 = vcombine.low %v195, %v202
    %v206 = vunpack.c.l.s4 1966171168
    %v207 = vunpack.c.0.s8 %v206
    %v208 = vlaneseq
    %v209 = vshrl.u32 %v208, 7
    %v210 = vsub.s32 %v207, %v209
    %v211 = vrot.slane %v203, %v210
    %v213 = vunpack.c.l.s4 1966171168
    %v214 = vunpack.c.0.s8 %v213
    %v215 = vlaneseq
    %v216 = vshrl.u32 %v215, 7
    %v217 = vsub.s32 %v214, %v216
    %v218 = vrot.slane %v204, %v217
    %v219 = vcombine.low %v211, %v218
    %vm220 = vcmask 523264
    %v221 = vsel %vm220, %v170, 0
    %v223 = vsel %vm220, %v219, 0
    %225 = vmatprep.subr.mxu0 0.0
    %226 = vmatpush1.msra.mxu0 %v91
    %227 = vmatprep.subr.mxu0 0.0
    %228 = vmatpush1.msra.mxu0 %v92
    %229 = vmatprep.subr.mxu0 0.0
    %230 = vmatpush1.msra.mxu0 %v93
    %231 = vmatprep.subr.mxu0 0.0
    %232 = vmatpush1.msra.mxu0 %v94
    %233 = vmatprep.subr.mxu0 0.0
    %234 = vmatpush1.msra.mxu0 %v95
    %235 = vmatprep.subr.mxu0 0.0
    %236 = vmatpush1.msra.mxu0 %v96
    %237 = vmatprep.subr.mxu0 0.0
    %238 = vmatpush1.msra.mxu0 %v97
    %239 = vmatprep.subr.mxu0 0.0
    %240 = vmatpush1.msra.mxu0 %v98
    %241 = vmatprep.subr.mxu0 0.0
    %242 = vmatpush1.msra.mxu0 0.0
    %243 = vmatprep.subr.mxu0 0.0
    %244 = vmatpush1.msra.mxu0 0.0
    %245 = vmatprep.subr.mxu0 0.0
    %246 = vmatpush1.msra.mxu0 0.0
    %247 = vmatprep.subr.mxu0 0.0
    %248 = vmatpush1.msra.mxu0 0.0
    %249 = vmatprep.subr.mxu0 0.0
    %250 = vmatpush1.msra.mxu0 0.0
    %251 = vmatprep.subr.mxu0 0.0
    %252 = vmatpush1.msra.mxu0 0.0
    %253 = vmatprep.subr.mxu0 0.0
    %254 = vmatpush1.msra.mxu0 0.0
    %255 = vmatprep.subr.mxu0 0.0
    %256 = vmatpush1.msra.mxu0 0.0
    %257 = vmatprep.subr.mxu0 0.0
    %258 = vmatpush1.msra.mxu0 0.0
    %259 = vmatprep.subr.mxu0 0.0
    %260 = vmatpush1.msra.mxu0 0.0
    %261 = vmatprep.subr.mxu0 0.0
    %262 = vmatpush1.msra.mxu0 0.0
    %263 = vmatprep.subr.mxu0 0.0
    %264 = vmatpush1.msra.mxu0 0.0
    %265 = vmatprep.subr.mxu0 0.0
    %266 = vmatpush1.msra.mxu0 0.0
    %267 = vmatprep.subr.mxu0 0.0
    %268 = vmatpush1.msra.mxu0 0.0
    %269 = vmatprep.subr.mxu0 0.0
    %270 = vmatpush1.msra.mxu0 0.0
    %271 = vmatprep.subr.mxu0 0.0
    %272 = vmatpush1.msra.mxu0 0.0
    %273 = vmatprep.subr.mxu0 0.0
    %274 = vmatpush1.msra.mxu0 0.0
    %275 = vmatprep.subr.mxu0 0.0
    %276 = vmatpush1.msra.mxu0 0.0
    %277 = vmatprep.subr.mxu0 0.0
    %278 = vmatpush1.msra.mxu0 0.0
    %279 = vmatprep.subr.mxu0 0.0
    %280 = vmatpush1.msra.mxu0 0.0
    %281 = vmatprep.subr.mxu0 0.0
    %282 = vmatpush1.msra.mxu0 0.0
    %283 = vmatprep.subr.mxu0 0.0
    %284 = vmatpush1.msra.mxu0 0.0
    %285 = vmatprep.subr.mxu0 0.0
    %286 = vmatpush1.msra.mxu0 0.0
    %287 = vmatprep.subr.mxu0 0.0
    %288 = vmatpush1.msra.mxu0 0.0
    %289 = vmatprep.mubr.f32.mxu0 0.0
    %290 = vmatmul.mubr.f32.gmra.mrb[0].mxu0 %v221
    %v291 = vpop.f32.mrb[0].mxu0
    %v292 = vadd.f32 %v104, %v291
    %v293 = vpop.f32.mrb[0].mxu0
    %294 = vmatprep.mubr.f32.mxu0 0.0
    %295 = vmatmul.mubr.f32.gmra.mrb[0].mxu0 %v223
    %v296 = vpop.f32.mrb[0].mxu0
    %v297 = vadd.f32 %v104, %v296
    %v298 = vpop.f32.mrb[0].mxu0
    %299 = vdwg.mxu0
    %300 = vst.msk [vmem:[#allocation7] sm:$0xff] %vm220, %v292
    %301 = vst.msk [vmem:[#allocation7 + $0x8] sm:$0xff] %vm220, %v297
    // Predicated region
    $region22: #{tpu_custom_call.1} parent=1 // pred_check
      _
    $region23: #{tpu_custom_call.1} parent=1 // pred_check_branch
      %303 = sbr.rel (0) target = $region25
    $region24: #{tpu_custom_call.1} parent=1 // pred_region
      %s305 = ssub.s32 256, 256
      %306 = vsyncadd [#allocation4], %s305
      %s307 = sshll.u32 [#allocation7], 4
      %s308 = int_to_ptr.vmem [resolvable:$true] %s307
      %313 = dma.vmem_to_hbm [thread:$0]  %s308, 256, %s3, [#allocation4], 128, 128, 8
    $region25: #{tpu_custom_call.1} parent=1 // pred_fallthru
      _
    // Predicated region
    $region26: #{tpu_custom_call.1} parent=1 // pred_check
      _
    $region27: #{tpu_custom_call.1} parent=1 // pred_check_branch
      %315 = sbr.rel (0) target = $region29
    $region28: #{tpu_custom_call.1} parent=1 // pred_region
      %316 = dma.done [#allocation4], 256
    $region29: #{tpu_custom_call.1} parent=1 // pred_fallthru
      _
    %317 = vsyncpa [#allocation3], 1
    %318 = vsyncpa [#allocation6], 1
    %319 = vsyncpa [#allocation4], 1

</llo_original>
